<compile_context>
chip_gen: v6e
topology: v6e:2x2x1
jax: 0.10.0
libtpu: 0.0.40
codegen_flags: <defaults>
</compile_context>

<pallas_src>
import jax
import jax.numpy as jnp
from jax.experimental import pallas as pl
from jax.experimental.pallas import tpu as pltpu


# ---------------------------------------------------------------------------
# Kernels
# ---------------------------------------------------------------------------
def _freq_conv_kernel(xr_ref, xi_ref, fr_ref, fi_ref, or_ref, oi_ref):
    """Cin != Cout: complex elementwise multiply + reduce over Cin.

    Block shapes (batch squeezed out of x / out):
      xr_ref, xi_ref: (Cin, Thw)
      fr_ref, fi_ref: (Cin, Tco, Thw)   reduction axis leading
      or_ref, oi_ref: (Tco, Thw)
    """
    cin = fr_ref.shape[0]
    fshape = or_ref.shape                             # (Tco, Thw)
    acc_r = jnp.zeros(fshape, jnp.float32)
    acc_i = jnp.zeros(fshape, jnp.float32)

    if cin <= 32:
        # Small Cin: static unroll -> pure VALU FMAs, accumulators in vregs.
        for i in range(cin):
            xr = jnp.broadcast_to(xr_ref[i:i + 1, :], fshape)  # 1 bcast/comp
            xi = jnp.broadcast_to(xi_ref[i:i + 1, :], fshape)
            fr = fr_ref[i]
            fi = fi_ref[i]
            acc_r = acc_r + (xr * fr - xi * fi)
            acc_i = acc_i + (xr * fi + xi * fr)
    else:
        # Large Cin: fori_loop bounds code size and live ranges.
        def body(i, carry):
            ar, ai = carry
            xr = jnp.broadcast_to(xr_ref[pl.ds(i, 1), :], fshape)
            xi = jnp.broadcast_to(xi_ref[pl.ds(i, 1), :], fshape)
            fr = fr_ref[i]
            fi = fi_ref[i]
            return ar + (xr * fr - xi * fi), ai + (xr * fi + xi * fr)
        acc_r, acc_i = jax.lax.fori_loop(0, cin, body, (acc_r, acc_i))

    or_ref[...] = acc_r
    oi_ref[...] = acc_i


def _freq_mul_kernel(xr_ref, xi_ref, fr_ref, fi_ref, or_ref, oi_ref):
    """Cin == Cout: pure complex elementwise multiply (memory-bound).

    Block shapes (batch squeezed out of x / out):
      xr_ref, xi_ref, or_ref, oi_ref: (Tc, Thw)
      fr_ref, fi_ref:                 (Tc, Thw)
    """
    xr = xr_ref[...]
    xi = xi_ref[...]
    fr = fr_ref[...]
    fi = fi_ref[...]
    or_ref[...] = xr * fr - xi * fi
    oi_ref[...] = xr * fi + xi * fr


# ---------------------------------------------------------------------------
# Tiling / VMEM configuration helpers
# ---------------------------------------------------------------------------
def _round_up(x, m):
    return ((x + m - 1) // m) * m


def _vmem_config():
    """Generation-aware budgets: big blocks on 128-MiB parts (v5e/v6e),
    conservative on v7x (64 MiB physical VMEM per TC)."""
    cap = 64 << 20
    try:
        info = pltpu.get_tpu_info()
        cap = getattr(info, "vmem_capacity_bytes", cap) or cap
    except Exception:
        pass
    if cap >= (100 << 20):                        # v5e / v6e: 128 MiB VMEM
        return {"filter_budget": 20 << 20, "vmem_limit": 96 << 20}
    return {"filter_budget": 8 << 20, "vmem_limit": 48 << 20}   # v7x


def _choose_hw_tile(hwp, cap):
    """Largest lane-dense tile (multiple of 128, <= cap) dividing padded HW."""
    cap = min(cap, hwp)
    t = max((cap // 128) * 128, 128)
    while t > 128 and hwp % t != 0:
        t -= 128
    return max(t, 128)


# Accumulator cap: acc_r + acc_i = 2 * 8192 * 4 B = 64 KiB = 16 vregs,
# leaving headroom for the per-step filter operand tiles (no spills).
_ACC_CAP = 8192


def _choose_cout_tile(coutp, cin, thw, filter_budget):
    """Cout tile: divisor of the 8-padded Coutp, multiple of 8, bounded by
    the filter-block VMEM budget and the accumulator vreg cap."""
    t = 8
    while (coutp % (2 * t) == 0
           and 2 * t * thw <= _ACC_CAP
           and 2 * cin * (2 * t) * thw * 4 <= filter_budget):
        t *= 2
    return min(t, coutp)


def _choose_c_hw_tiles(c, hwp, budget):
    """Joint (channel, HW) tile for the elementwise path: 6 f32 streams
    (x_r, x_i, f_r, f_i, o_r, o_i), double-buffered, must fit the budget."""
    def blk_bytes(tc_, thw_):
        return 6 * 2 * tc_ * thw_ * 4

    thw = _choose_hw_tile(hwp, cap=2048)
    tc = c
    if c % 8 == 0:
        while tc % 16 == 0 and tc > 8 and blk_bytes(tc, thw) > budget:
            tc //= 2
    while blk_bytes(tc, thw) > budget and thw > 128:
        thw = _choose_hw_tile(hwp, cap=thw - 128)
    return tc, thw


# ---------------------------------------------------------------------------
# Filter preparation (one-time relayout — hoisted out of the forward pass)
# ---------------------------------------------------------------------------
def prepare_filters(f_r, f_i):
    """Relayout the complex filter (real/imag float32 pair) ONCE per parameter.

    Cin != Cout (4-D): (Cout, Cin, K, K) -> (Cin, Coutp, HWp): reduction axis
        leading; Cout 8-padded, HW 128-padded so stores stay lane-dense.
    Cin == Cout (3-D): (C, K, K) -> (C, HWp).
    """
    if f_r.ndim == 4:
        cout, cin, kh, kw = f_r.shape
        hw = kh * kw
        hwp = _round_up(hw, 128)
        coutp = _round_up(cout, 8)

        def prep(f):
            f = jnp.transpose(f.reshape(cout, cin, hw), (1, 0, 2))
            if coutp != cout or hwp != hw:
                f = jnp.pad(f, [(0, 0), (0, coutp - cout), (0, hwp - hw)])
            return f

        return ("conv", prep(f_r), prep(f_i), (cout, cin, kh, kw))
    else:
        c, kh, kw = f_r.shape
        hw = kh * kw
        hwp = _round_up(hw, 128)

        def prep(f):
            f = f.reshape(c, hw)
            if hwp != hw:
                f = jnp.pad(f, [(0, 0), (0, hwp - hw)])
            return f

        return ("mul", prep(f_r), prep(f_i), (c, kh, kw))


# ---------------------------------------------------------------------------
# Forward wrapper
# ---------------------------------------------------------------------------
def frequency_conv2d(x_r, x_i, filters):
    """x_*: (B, Cin, H, W) float32; filters: output of prepare_filters().

    Returns (out_r, out_i), each (B, Cout, H, W) float32.
    """
    mode, fr, fi, meta = filters
    B, Cin, H, W = x_r.shape
    HW = H * W
    HWp = _round_up(HW, 128)
    cfg = _vmem_config()

    def pad_hw(a):
        a = a.reshape(B, a.shape[1], HW)
        if HWp != HW:
            a = jnp.pad(a, [(0, 0), (0, 0), (0, HWp - HW)])
        return a

    xr = pad_hw(x_r)
    xi = pad_hw(x_i)

    if mode == "conv":                                # ---- Cin != Cout path
        Cout, Cin_f, Kh, Kw = meta
        assert Cin_f == Cin and (Kh, Kw) == (H, W), \
            "FrequencyConv2D broadcast requires H == W == kernel_size"
        Coutp = fr.shape[1]

        thw = _choose_hw_tile(HWp, cap=1024)
        tco = _choose_cout_tile(Coutp, Cin, thw, cfg["filter_budget"])
        # Batch innermost ("arbitrary"): filter block index is constant across
        # consecutive b steps -> filter stays VMEM-resident, DMA'd once/call.
        grid = (Coutp // tco, HWp // thw, B)

        x_spec = pl.BlockSpec((None, Cin, thw), lambda co, j, b: (b, 0, j))
        f_spec = pl.BlockSpec((Cin, tco, thw), lambda co, j, b: (0, co, j))
        o_spec = pl.BlockSpec((None, tco, thw), lambda co, j, b: (b, co, j))
        o_shape = jax.ShapeDtypeStruct((B, Coutp, HWp), jnp.float32)

        out_r, out_i = pl.pallas_call(
            _freq_conv_kernel,
            out_shape=(o_shape, o_shape),
            grid_spec=pltpu.PrefetchScalarGridSpec(
                num_scalar_prefetch=0,
                grid=grid,
                in_specs=[x_spec, x_spec, f_spec, f_spec],
                out_specs=[o_spec, o_spec],
            ),
            compiler_params=pltpu.CompilerParams(
                dimension_semantics=("parallel", "parallel", "arbitrary"),
                vmem_limit_bytes=cfg["vmem_limit"]),
        )(xr, xi, fr, fi)

        if Coutp != Cout or HWp != HW:
            out_r = out_r[:, :Cout, :HW]
            out_i = out_i[:, :Cout, :HW]
        return (out_r.reshape(B, Cout, H, W), out_i.reshape(B, Cout, H, W))

    else:                                             # ---- Cin == Cout path
        C, Kh, Kw = meta
        assert C == Cin and (Kh, Kw) == (H, W)

        tc, thw = _choose_c_hw_tiles(C, HWp, cfg["filter_budget"])
        grid = (C // tc, HWp // thw, B)               # b innermost: f resident

        x_spec = pl.BlockSpec((None, tc, thw), lambda c, j, b: (b, c, j))
        f_spec = pl.BlockSpec((tc, thw), lambda c, j, b: (c, j))
        o_spec = pl.BlockSpec((None, tc, thw), lambda c, j, b: (b, c, j))
        o_shape = jax.ShapeDtypeStruct((B, C, HWp), jnp.float32)

        out_r, out_i = pl.pallas_call(
            _freq_mul_kernel,
            out_shape=(o_shape, o_shape),
            grid_spec=pltpu.PrefetchScalarGridSpec(
                num_scalar_prefetch=0,
                grid=grid,
                in_specs=[x_spec, x_spec, f_spec, f_spec],
                out_specs=[o_spec, o_spec],
            ),
            compiler_params=pltpu.CompilerParams(
                dimension_semantics=("parallel", "parallel", "arbitrary"),
                vmem_limit_bytes=cfg["vmem_limit"]),
        )(xr, xi, fr, fi)

        if HWp != HW:
            out_r = out_r[..., :HW]
            out_i = out_i[..., :HW]
        return (out_r.reshape(B, C, H, W), out_i.reshape(B, C, H, W))


# ---------------------------------------------------------------------------
# Parameter init (mirrors Initialization(): uniform(-1/sqrt(Cin), 1/sqrt(Cin)))
# ---------------------------------------------------------------------------
def init_filters(key, in_channels, out_channels, kernel_size):
    bound = 1.0 / (in_channels ** 0.5)
    if in_channels != out_channels:
        shape = (out_channels, in_channels, kernel_size, kernel_size)
    else:
        shape = (out_channels, kernel_size, kernel_size)
    kr, ki = jax.random.split(key)
    f_r = jax.random.uniform(kr, shape, jnp.float32, -bound, bound)
    f_i = jax.random.uniform(ki, shape, jnp.float32, -bound, bound)
    return f_r, f_i


# ---------------------------------------------------------------------------
# Main
# ---------------------------------------------------------------------------
if __name__ == "__main__":
    key = jax.random.PRNGKey(0)
    k_x, k_f, k_f2 = jax.random.split(key, 3)

    # ---- case 1: in_channels != out_channels (contraction path) ----
    B, Cin, Cout, K = 2, 4, 8, 16
    H = W = K                        # PyTorch broadcast requires H == W == K
    kr, ki = jax.random.split(k_x)
    x_r = jax.random.normal(kr, (B, Cin, H, W), jnp.float32)
    x_i = jax.random.normal(ki, (B, Cin, H, W), jnp.float32)
    f_r, f_i = init_filters(k_f, Cin, Cout, K)
    filt1 = prepare_filters(f_r, f_i)        # one-time relayout, cached

    out_r, out_i = frequency_conv2d(x_r, x_i, filt1)
    jax.block_until_ready((out_r, out_i))

    # reference (plain JAX, complex) for sanity
    x_c = x_r + 1j * x_i
    f_c = f_r + 1j * f_i
    ref = jnp.sum(x_c[:, None, :, :, :] * f_c[None, :, :, :, :], axis=2)
    assert jnp.allclose(out_r, ref.real, atol=1e-5, rtol=1e-5)
    assert jnp.allclose(out_i, ref.imag, atol=1e-5, rtol=1e-5)

    # ---- case 2: in_channels == out_channels (elementwise path) ----
    f2_r, f2_i = init_filters(k_f2, Cin, Cin, K)
    filt2 = prepare_filters(f2_r, f2_i)
    out2_r, out2_i = frequency_conv2d(x_r, x_i, filt2)
    jax.block_until_ready((out2_r, out2_i))
    ref2 = x_c * (f2_r + 1j * f2_i)[None]
    assert jnp.allclose(out2_r, ref2.real, atol=1e-5, rtol=1e-5)
    assert jnp.allclose(out2_i, ref2.imag, atol=1e-5, rtol=1e-5)

    print("KERNEL_OK")
</pallas_src>

<mosaic_0001>
module attributes {stable_mosaic.version = 11 : i64} {
  func.func @_freq_conv_kernel(%arg0: i32, %arg1: i32, %arg2: i32, %arg3: memref<1x4x256xf32, #tpu.memory_space<vmem>>, %arg4: memref<1x4x256xf32, #tpu.memory_space<vmem>>, %arg5: memref<4x8x256xf32, #tpu.memory_space<vmem>>, %arg6: memref<4x8x256xf32, #tpu.memory_space<vmem>>, %arg7: memref<1x8x256xf32, #tpu.memory_space<vmem>>, %arg8: memref<1x8x256xf32, #tpu.memory_space<vmem>>) attributes {dimension_semantics = [#tpu.dimension_semantics<parallel>, #tpu.dimension_semantics<parallel>, #tpu.dimension_semantics<arbitrary>], iteration_bounds = array<i64: 1, 1, 2>, scalar_prefetch = 0 : i64, scratch_operands = 0 : i64, tpu.core_type = #tpu.core_type<tc>, window_params = [{transform_indices = @transform_0, window_bounds = array<i64: 1, 4, 256>}, {transform_indices = @transform_1, window_bounds = array<i64: 1, 4, 256>}, {transform_indices = @transform_2, window_bounds = array<i64: 4, 8, 256>}, {transform_indices = @transform_3, window_bounds = array<i64: 4, 8, 256>}, {transform_indices = @transform_4, window_bounds = array<i64: 1, 8, 256>}, {transform_indices = @transform_5, window_bounds = array<i64: 1, 8, 256>}]} {
    %cst = arith.constant 0.000000e+00 : f32
    %0 = vector.broadcast %cst : f32 to vector<8x256xf32>
    %cst_0 = arith.constant 0.000000e+00 : f32
    %1 = vector.broadcast %cst_0 : f32 to vector<8x256xf32>
    %c0 = arith.constant 0 : index
    %c0_1 = arith.constant 0 : index
    %c0_2 = arith.constant 0 : index
    %2 = vector.load %arg3[%c0, %c0_1, %c0_2] : memref<1x4x256xf32, #tpu.memory_space<vmem>>, vector<1x1x256xf32>
    %3 = vector.shape_cast %2 : vector<1x1x256xf32> to vector<1x256xf32>
    %4 = vector.shape_cast %3 : vector<1x256xf32> to vector<1x256xf32>
    %5 = vector.broadcast %4 : vector<1x256xf32> to vector<8x256xf32>
    %c0_3 = arith.constant 0 : index
    %c0_4 = arith.constant 0 : index
    %c0_5 = arith.constant 0 : index
    %6 = vector.load %arg4[%c0_3, %c0_4, %c0_5] : memref<1x4x256xf32, #tpu.memory_space<vmem>>, vector<1x1x256xf32>
    %7 = vector.shape_cast %6 : vector<1x1x256xf32> to vector<1x256xf32>
    %8 = vector.shape_cast %7 : vector<1x256xf32> to vector<1x256xf32>
    %9 = vector.broadcast %8 : vector<1x256xf32> to vector<8x256xf32>
    %c0_6 = arith.constant 0 : index
    %c0_7 = arith.constant 0 : index
    %c0_8 = arith.constant 0 : index
    %10 = vector.load %arg5[%c0_6, %c0_7, %c0_8] : memref<4x8x256xf32, #tpu.memory_space<vmem>>, vector<1x8x256xf32>
    %11 = vector.shape_cast %10 : vector<1x8x256xf32> to vector<8x256xf32>
    %c0_9 = arith.constant 0 : index
    %c0_10 = arith.constant 0 : index
    %c0_11 = arith.constant 0 : index
    %12 = vector.load %arg6[%c0_9, %c0_10, %c0_11] : memref<4x8x256xf32, #tpu.memory_space<vmem>>, vector<1x8x256xf32>
    %13 = vector.shape_cast %12 : vector<1x8x256xf32> to vector<8x256xf32>
    %14 = arith.mulf %5, %11 : vector<8x256xf32>
    %15 = arith.mulf %9, %13 : vector<8x256xf32>
    %16 = arith.subf %14, %15 : vector<8x256xf32>
    %17 = arith.addf %0, %16 : vector<8x256xf32>
    %18 = arith.mulf %5, %13 : vector<8x256xf32>
    %19 = arith.mulf %9, %11 : vector<8x256xf32>
    %20 = arith.addf %18, %19 : vector<8x256xf32>
    %21 = arith.addf %1, %20 : vector<8x256xf32>
    %c0_12 = arith.constant 0 : index
    %c1 = arith.constant 1 : index
    %c0_13 = arith.constant 0 : index
    %22 = vector.load %arg3[%c0_12, %c1, %c0_13] : memref<1x4x256xf32, #tpu.memory_space<vmem>>, vector<1x1x256xf32>
    %23 = vector.shape_cast %22 : vector<1x1x256xf32> to vector<1x256xf32>
    %24 = vector.shape_cast %23 : vector<1x256xf32> to vector<1x256xf32>
    %25 = vector.broadcast %24 : vector<1x256xf32> to vector<8x256xf32>
    %c0_14 = arith.constant 0 : index
    %c1_15 = arith.constant 1 : index
    %c0_16 = arith.constant 0 : index
    %26 = vector.load %arg4[%c0_14, %c1_15, %c0_16] : memref<1x4x256xf32, #tpu.memory_space<vmem>>, vector<1x1x256xf32>
    %27 = vector.shape_cast %26 : vector<1x1x256xf32> to vector<1x256xf32>
    %28 = vector.shape_cast %27 : vector<1x256xf32> to vector<1x256xf32>
    %29 = vector.broadcast %28 : vector<1x256xf32> to vector<8x256xf32>
    %c1_17 = arith.constant 1 : index
    %c0_18 = arith.constant 0 : index
    %c0_19 = arith.constant 0 : index
    %30 = vector.load %arg5[%c1_17, %c0_18, %c0_19] : memref<4x8x256xf32, #tpu.memory_space<vmem>>, vector<1x8x256xf32>
    %31 = vector.shape_cast %30 : vector<1x8x256xf32> to vector<8x256xf32>
    %c1_20 = arith.constant 1 : index
    %c0_21 = arith.constant 0 : index
    %c0_22 = arith.constant 0 : index
    %32 = vector.load %arg6[%c1_20, %c0_21, %c0_22] : memref<4x8x256xf32, #tpu.memory_space<vmem>>, vector<1x8x256xf32>
    %33 = vector.shape_cast %32 : vector<1x8x256xf32> to vector<8x256xf32>
    %34 = arith.mulf %25, %31 : vector<8x256xf32>
    %35 = arith.mulf %29, %33 : vector<8x256xf32>
    %36 = arith.subf %34, %35 : vector<8x256xf32>
    %37 = arith.addf %17, %36 : vector<8x256xf32>
    %38 = arith.mulf %25, %33 : vector<8x256xf32>
    %39 = arith.mulf %29, %31 : vector<8x256xf32>
    %40 = arith.addf %38, %39 : vector<8x256xf32>
    %41 = arith.addf %21, %40 : vector<8x256xf32>
    %c0_23 = arith.constant 0 : index
    %c2 = arith.constant 2 : index
    %c0_24 = arith.constant 0 : index
    %42 = vector.load %arg3[%c0_23, %c2, %c0_24] : memref<1x4x256xf32, #tpu.memory_space<vmem>>, vector<1x1x256xf32>
    %43 = vector.shape_cast %42 : vector<1x1x256xf32> to vector<1x256xf32>
    %44 = vector.shape_cast %43 : vector<1x256xf32> to vector<1x256xf32>
    %45 = vector.broadcast %44 : vector<1x256xf32> to vector<8x256xf32>
    %c0_25 = arith.constant 0 : index
    %c2_26 = arith.constant 2 : index
    %c0_27 = arith.constant 0 : index
    %46 = vector.load %arg4[%c0_25, %c2_26, %c0_27] : memref<1x4x256xf32, #tpu.memory_space<vmem>>, vector<1x1x256xf32>
    %47 = vector.shape_cast %46 : vector<1x1x256xf32> to vector<1x256xf32>
    %48 = vector.shape_cast %47 : vector<1x256xf32> to vector<1x256xf32>
    %49 = vector.broadcast %48 : vector<1x256xf32> to vector<8x256xf32>
    %c2_28 = arith.constant 2 : index
    %c0_29 = arith.constant 0 : index
    %c0_30 = arith.constant 0 : index
    %50 = vector.load %arg5[%c2_28, %c0_29, %c0_30] : memref<4x8x256xf32, #tpu.memory_space<vmem>>, vector<1x8x256xf32>
    %51 = vector.shape_cast %50 : vector<1x8x256xf32> to vector<8x256xf32>
    %c2_31 = arith.constant 2 : index
    %c0_32 = arith.constant 0 : index
    %c0_33 = arith.constant 0 : index
    %52 = vector.load %arg6[%c2_31, %c0_32, %c0_33] : memref<4x8x256xf32, #tpu.memory_space<vmem>>, vector<1x8x256xf32>
    %53 = vector.shape_cast %52 : vector<1x8x256xf32> to vector<8x256xf32>
    %54 = arith.mulf %45, %51 : vector<8x256xf32>
    %55 = arith.mulf %49, %53 : vector<8x256xf32>
    %56 = arith.subf %54, %55 : vector<8x256xf32>
    %57 = arith.addf %37, %56 : vector<8x256xf32>
    %58 = arith.mulf %45, %53 : vector<8x256xf32>
    %59 = arith.mulf %49, %51 : vector<8x256xf32>
    %60 = arith.addf %58, %59 : vector<8x256xf32>
    %61 = arith.addf %41, %60 : vector<8x256xf32>
    %c0_34 = arith.constant 0 : index
    %c3 = arith.constant 3 : index
    %c0_35 = arith.constant 0 : index
    %62 = vector.load %arg3[%c0_34, %c3, %c0_35] : memref<1x4x256xf32, #tpu.memory_space<vmem>>, vector<1x1x256xf32>
    %63 = vector.shape_cast %62 : vector<1x1x256xf32> to vector<1x256xf32>
    %64 = vector.shape_cast %63 : vector<1x256xf32> to vector<1x256xf32>
    %65 = vector.broadcast %64 : vector<1x256xf32> to vector<8x256xf32>
    %c0_36 = arith.constant 0 : index
    %c3_37 = arith.constant 3 : index
    %c0_38 = arith.constant 0 : index
    %66 = vector.load %arg4[%c0_36, %c3_37, %c0_38] : memref<1x4x256xf32, #tpu.memory_space<vmem>>, vector<1x1x256xf32>
    %67 = vector.shape_cast %66 : vector<1x1x256xf32> to vector<1x256xf32>
    %68 = vector.shape_cast %67 : vector<1x256xf32> to vector<1x256xf32>
    %69 = vector.broadcast %68 : vector<1x256xf32> to vector<8x256xf32>
    %c3_39 = arith.constant 3 : index
    %c0_40 = arith.constant 0 : index
    %c0_41 = arith.constant 0 : index
    %70 = vector.load %arg5[%c3_39, %c0_40, %c0_41] : memref<4x8x256xf32, #tpu.memory_space<vmem>>, vector<1x8x256xf32>
    %71 = vector.shape_cast %70 : vector<1x8x256xf32> to vector<8x256xf32>
    %c3_42 = arith.constant 3 : index
    %c0_43 = arith.constant 0 : index
    %c0_44 = arith.constant 0 : index
    %72 = vector.load %arg6[%c3_42, %c0_43, %c0_44] : memref<4x8x256xf32, #tpu.memory_space<vmem>>, vector<1x8x256xf32>
    %73 = vector.shape_cast %72 : vector<1x8x256xf32> to vector<8x256xf32>
    %74 = arith.mulf %65, %71 : vector<8x256xf32>
    %75 = arith.mulf %69, %73 : vector<8x256xf32>
    %76 = arith.subf %74, %75 : vector<8x256xf32>
    %77 = arith.addf %57, %76 : vector<8x256xf32>
    %78 = arith.mulf %65, %73 : vector<8x256xf32>
    %79 = arith.mulf %69, %71 : vector<8x256xf32>
    %80 = arith.addf %78, %79 : vector<8x256xf32>
    %81 = arith.addf %61, %80 : vector<8x256xf32>
    %c0_45 = arith.constant 0 : index
    %c0_46 = arith.constant 0 : index
    %c0_47 = arith.constant 0 : index
    %82 = vector.load %arg7[%c0_45, %c0_46, %c0_47] : memref<1x8x256xf32, #tpu.memory_space<vmem>>, vector<1x8x256xf32>
    %83 = vector.shape_cast %82 : vector<1x8x256xf32> to vector<8x256xf32>
    %84 = vector.shape_cast %77 : vector<8x256xf32> to vector<1x8x256xf32>
    tpu.vector_store %arg7[%c0_45, %c0_46, %c0_47], %84 {strides = array<i32>} : memref<1x8x256xf32, #tpu.memory_space<vmem>>, vector<1x8x256xf32>,
    %c0_48 = arith.constant 0 : index
    %c0_49 = arith.constant 0 : index
    %c0_50 = arith.constant 0 : index
    %85 = vector.load %arg8[%c0_48, %c0_49, %c0_50] : memref<1x8x256xf32, #tpu.memory_space<vmem>>, vector<1x8x256xf32>
    %86 = vector.shape_cast %85 : vector<1x8x256xf32> to vector<8x256xf32>
    %87 = vector.shape_cast %81 : vector<8x256xf32> to vector<1x8x256xf32>
    tpu.vector_store %arg8[%c0_48, %c0_49, %c0_50], %87 {strides = array<i32>} : memref<1x8x256xf32, #tpu.memory_space<vmem>>, vector<1x8x256xf32>,
    return
  }
  func.func @transform_0(%arg0: i32, %arg1: i32, %arg2: i32) -> (i32, i32, i32) {
    %c0_i32 = arith.constant 0 : i32
    %c0_i32_0 = arith.constant 0 : i32
    return %arg2, %c0_i32, %arg1 : i32, i32, i32
  }
  func.func @transform_1(%arg0: i32, %arg1: i32, %arg2: i32) -> (i32, i32, i32) {
    %c0_i32 = arith.constant 0 : i32
    %c0_i32_0 = arith.constant 0 : i32
    return %arg2, %c0_i32, %arg1 : i32, i32, i32
  }
  func.func @transform_2(%arg0: i32, %arg1: i32, %arg2: i32) -> (i32, i32, i32) {
    %c0_i32 = arith.constant 0 : i32
    %c0_i32_0 = arith.constant 0 : i32
    return %c0_i32, %arg0, %arg1 : i32, i32, i32
  }
  func.func @transform_3(%arg0: i32, %arg1: i32, %arg2: i32) -> (i32, i32, i32) {
    %c0_i32 = arith.constant 0 : i32
    %c0_i32_0 = arith.constant 0 : i32
    return %c0_i32, %arg0, %arg1 : i32, i32, i32
  }
  func.func @transform_4(%arg0: i32, %arg1: i32, %arg2: i32) -> (i32, i32, i32) {
    %c0_i32 = arith.constant 0 : i32
    return %arg2, %arg0, %arg1 : i32, i32, i32
  }
  func.func @transform_5(%arg0: i32, %arg1: i32, %arg2: i32) -> (i32, i32, i32) {
    %c0_i32 = arith.constant 0 : i32
    return %arg2, %arg0, %arg1 : i32, i32, i32
  }
}

</mosaic_0001>

<llo_original>
// kernel: tpu_custom_call.1
$region0: #{tpu_custom_call.1}
  #allocation0 [shape = 'u32[]', space=smem, size = 0x4, offset = 0x4, fixed_abs, tag = 'smem constant byte address 0x4 - core index']
  #allocation1 [shape = 'u32[144,128]{1,0:T(1,128)}', space=vmem, size = 0x12000, scoped, tag = 'internal scratch']
  %s0 = inlined_call_operand.hbm [shape: f32[2,4,256], index: 0, kind: input, shape index: {}]
  %s1 = inlined_call_operand.hbm [shape: f32[2,4,256], index: 1, kind: input, shape index: {}]
  %s2 = inlined_call_operand.hbm [shape: f32[4,8,256], index: 2, kind: input, shape index: {}]
  %s3 = inlined_call_operand.hbm [shape: f32[4,8,256], index: 3, kind: input, shape index: {}]
  %s4 = inlined_call_operand.hbm [shape: f32[2,8,256], index: 4, kind: output, shape index: {0}]
  %s5 = inlined_call_operand.hbm [shape: f32[2,8,256], index: 5, kind: output, shape index: {1}]
  %6 = xla_tuple %s4, %s5
  %s7 = sld [smem:[#allocation0]]
  $region73: #{tpu_custom_call.1} parent=0
    _
  %s9 = ssub.s32 1, %s7
  %s10 = scalar_select 0, %s9, %s7
  $region1: #{tpu_custom_call.1} parent=0
    #allocation2 [shape = 'u8[8192]{0}', space=vmem, size = 0x2000, scoped, tag = 'input window, operand 0']
    #allocation3 [shape = 's32[2]{0}', space=sflag, size = 0x8, scoped, tag = 'scoped memory for tpu_custom_call.1']
    #allocation4 [shape = 's32[2]{0}', space=sflag, size = 0x8, scoped, tag = 'scoped memory for tpu_custom_call.1']
    #allocation5 [shape = 'u8[8192]{0}', space=vmem, size = 0x2000, scoped, tag = 'input window, operand 1']
    #allocation6 [shape = 's32[2]{0}', space=sflag, size = 0x8, scoped, tag = 'scoped memory for tpu_custom_call.1']
    #allocation7 [shape = 'u8[32768]{0}', space=vmem, size = 0x8000, scoped, tag = 'input window, operand 2, single buffered']
    #allocation8 [shape = 'u8[32768]{0}', space=vmem, size = 0x8000, scoped, tag = 'input window, operand 3, single buffered']
    #allocation9 [shape = 's32[1]{0}', space=sflag, size = 0x4, scoped, tag = 'scoped memory for tpu_custom_call.1']
    #allocation10 [shape = 'u8[16384]{0}', space=vmem, size = 0x4000, scoped, tag = 'output window, operand 0']
    #allocation11 [shape = 'u8[16384]{0}', space=vmem, size = 0x4000, scoped, tag = 'output window, operand 1']
    #allocation12 [shape = 's32[2]{0}', space=sflag, size = 0x8, scoped, tag = 'scoped memory for tpu_custom_call.1']
    %11 = vsyncpa [#allocation3], 0
    %s12 = scalar_lea.sflag [#allocation3], 1
    %13 = vsyncpa %s12, 0
    %14 = vsyncpa [#allocation6], 0
    %s15 = scalar_lea.sflag [#allocation6], 1
    %16 = vsyncpa %s15, 0
    %17 = vsyncpa [#allocation9], 0
    %18 = vsyncpa [#allocation4], 0
    %s19 = scalar_lea.sflag [#allocation4], 1
    %20 = vsyncpa %s19, 0
    %21 = vsyncpa [#allocation12], 0
    %s22 = scalar_lea.sflag [#allocation12], 1
    %23 = vsyncpa %s22, 0
    loop: start=0, step=1, limit=4
    $region2: #{tpu_custom_call.1} parent=1 // loop_pre_header
      _
    $region3: #{tpu_custom_call.1} parent=1 // loop_header
      %s25 = sphi 0, %s29
      %p26 = scmp.ge.s32.totalorder %s25, 4
      %s32 = sphi 0, %s51
      %s33 = sphi 0, %s47
      %s34 = sphi 0, %s43
      %s35 = sphi 0, %s32
      %s36 = sphi 0, %s33
      %s37 = sphi 0, %s34
      %s38 = sphi 0, %s35
      %s39 = sphi 0, %s36
      %s40 = sphi 0, %s37
      %s56 = sphi 0, %s58
      %s59 = sphi 0, %s56
      %s60 = sphi 0, %s59
      %s76 = sphi 0, %s60
      %s84 = sphi 0, %s86
      %s87 = sphi 0, %s84
      %s88 = sphi 0, %s87
      %s104 = sphi 0, %s88
      %s112 = sphi 0, %s114
      %s115 = sphi 0, %s112
      %s116 = sphi 0, %s115
      %s132 = sphi 0, %s116
      %s140 = sphi 0, %s142
      %s143 = sphi 0, %s140
      %s144 = sphi 0, %s143
      %s160 = sphi 0, %s144
      %s170 = sphi 0, %s172
      %s173 = sphi 0, %s170
      %s174 = sphi 0, %s173
      %s190 = sphi 0, %s174
      %s200 = sphi 0, %s202
      %s203 = sphi 0, %s200
      %s204 = sphi 0, %s203
      %s220 = sphi 0, %s204
    $region4: #{tpu_custom_call.1} parent=1 // loop_header_branch
      %28 = sbr.rel (%p26) target = $region8
    $region5: #{tpu_custom_call.1} parent=1 // loop_body
      %s30 = ssub.s32 %s25, 1
      %s31 = ssub.s32 %s25, 2
      %s41 = sadd.s32 1, %s34
      %p42 = scmp.ge.s32.totalorder %s41, 2
      %s43 = scalar_select %p42, 0, %s41
      %s44 = sadd.s32 1, %s33
      %s45 = scalar_select %p42, %s44, %s33
      %p46 = scmp.ge.s32.totalorder %s45, 1
      %s47 = scalar_select %p46, 0, %s45
      %s48 = sadd.s32 1, %s32
      %s49 = scalar_select %p46, %s48, %s32
      %p50 = scmp.ge.s32.totalorder %s49, 1
      %s51 = scalar_select %p50, 0, %s49
      %s52 = ssub.s32 %s34, %s43
      %s53 = ssub.s32 %s33, %s47
      %s54 = sor.u32 %s52, %s53
      %p55 = scmp.eq.s32.totalorder %s54, 0
      %s57 = sadd.s32 %s56, 1
      %s58 = scalar_select %p55, %s56, %s57
      %p61 = pneg %p55
      %p62 = scmp.eq.s32.totalorder %s25, 1
      %p63 = por %p61, %p62
      %p64 = scmp.ne.s32.totalorder %s56, %s59
      %p65 = scmp.eq.s32.totalorder %s25, 0
      %p66 = por %p64, %p65
      %p67 = scmp.ne.s32.totalorder %s56, %s59
      %p68 = scmp.eq.s32.totalorder %s30, 1
      %p69 = por %p67, %p68
      %p70 = scmp.ne.s32.totalorder %s59, %s60
      %p71 = scmp.eq.s32.totalorder %s30, 0
      %p72 = por %p70, %p71
      %p73 = scmp.ne.s32.totalorder %s59, %s60
      %p74 = scmp.eq.s32.totalorder %s31, 1
      %p75 = por %p73, %p74
      %p77 = scmp.ne.s32.totalorder %s60, %s76
      %p78 = scmp.eq.s32.totalorder %s31, 0
      %p79 = por %p77, %p78
      %s80 = ssub.s32 %s34, %s43
      %s81 = ssub.s32 %s33, %s47
      %s82 = sor.u32 %s80, %s81
      %p83 = scmp.eq.s32.totalorder %s82, 0
      %s85 = sadd.s32 %s84, 1
      %s86 = scalar_select %p83, %s84, %s85
      %p89 = pneg %p83
      %p90 = scmp.eq.s32.totalorder %s25, 1
      %p91 = por %p89, %p90
      %p92 = scmp.ne.s32.totalorder %s84, %s87
      %p93 = scmp.eq.s32.totalorder %s25, 0
      %p94 = por %p92, %p93
      %p95 = scmp.ne.s32.totalorder %s84, %s87
      %p96 = scmp.eq.s32.totalorder %s30, 1
      %p97 = por %p95, %p96
      %p98 = scmp.ne.s32.totalorder %s87, %s88
      %p99 = scmp.eq.s32.totalorder %s30, 0
      %p100 = por %p98, %p99
      %p101 = scmp.ne.s32.totalorder %s87, %s88
      %p102 = scmp.eq.s32.totalorder %s31, 1
      %p103 = por %p101, %p102
      %p105 = scmp.ne.s32.totalorder %s88, %s104
      %p106 = scmp.eq.s32.totalorder %s31, 0
      %p107 = por %p105, %p106
      %s108 = ssub.s32 %s32, %s51
      %s109 = ssub.s32 %s33, %s47
      %s110 = sor.u32 %s108, %s109
      %p111 = scmp.eq.s32.totalorder %s110, 0
      %s113 = sadd.s32 %s112, 1
      %s114 = scalar_select %p111, %s112, %s113
      %p117 = pneg %p111
      %p118 = scmp.eq.s32.totalorder %s25, 1
      %p119 = por %p117, %p118
      %p120 = scmp.ne.s32.totalorder %s112, %s115
      %p121 = scmp.eq.s32.totalorder %s25, 0
      %p122 = por %p120, %p121
      %p123 = scmp.ne.s32.totalorder %s112, %s115
      %p124 = scmp.eq.s32.totalorder %s30, 1
      %p125 = por %p123, %p124
      %p126 = scmp.ne.s32.totalorder %s115, %s116
      %p127 = scmp.eq.s32.totalorder %s30, 0
      %p128 = por %p126, %p127
      %p129 = scmp.ne.s32.totalorder %s115, %s116
      %p130 = scmp.eq.s32.totalorder %s31, 1
      %p131 = por %p129, %p130
      %p133 = scmp.ne.s32.totalorder %s116, %s132
      %p134 = scmp.eq.s32.totalorder %s31, 0
      %p135 = por %p133, %p134
      %s136 = ssub.s32 %s32, %s51
      %s137 = ssub.s32 %s33, %s47
      %s138 = sor.u32 %s136, %s137
      %p139 = scmp.eq.s32.totalorder %s138, 0
      %s141 = sadd.s32 %s140, 1
      %s142 = scalar_select %p139, %s140, %s141
      %p145 = pneg %p139
      %p146 = scmp.eq.s32.totalorder %s25, 1
      %p147 = por %p145, %p146
      %p148 = scmp.ne.s32.totalorder %s140, %s143
      %p149 = scmp.eq.s32.totalorder %s25, 0
      %p150 = por %p148, %p149
      %p151 = scmp.ne.s32.totalorder %s140, %s143
      %p152 = scmp.eq.s32.totalorder %s30, 1
      %p153 = por %p151, %p152
      %p154 = scmp.ne.s32.totalorder %s143, %s144
      %p155 = scmp.eq.s32.totalorder %s30, 0
      %p156 = por %p154, %p155
      %p157 = scmp.ne.s32.totalorder %s143, %s144
      %p158 = scmp.eq.s32.totalorder %s31, 1
      %p159 = por %p157, %p158
      %p161 = scmp.ne.s32.totalorder %s144, %s160
      %p162 = scmp.eq.s32.totalorder %s31, 0
      %p163 = por %p161, %p162
      %s164 = ssub.s32 %s34, %s43
      %s165 = ssub.s32 %s32, %s51
      %s166 = sor.u32 %s164, %s165
      %s167 = ssub.s32 %s33, %s47
      %s168 = sor.u32 %s166, %s167
      %p169 = scmp.eq.s32.totalorder %s168, 0
      %s171 = sadd.s32 %s170, 1
      %s172 = scalar_select %p169, %s170, %s171
      %p175 = pneg %p169
      %p176 = scmp.eq.s32.totalorder %s25, 1
      %p177 = por %p175, %p176
      %p178 = scmp.ne.s32.totalorder %s170, %s173
      %p179 = scmp.eq.s32.totalorder %s25, 0
      %p180 = por %p178, %p179
      %p181 = scmp.ne.s32.totalorder %s170, %s173
      %p182 = scmp.eq.s32.totalorder %s30, 1
      %p183 = por %p181, %p182
      %p184 = scmp.ne.s32.totalorder %s173, %s174
      %p185 = scmp.eq.s32.totalorder %s30, 0
      %p186 = por %p184, %p185
      %p187 = scmp.ne.s32.totalorder %s173, %s174
      %p188 = scmp.eq.s32.totalorder %s31, 1
      %p189 = por %p187, %p188
      %p191 = scmp.ne.s32.totalorder %s174, %s190
      %p192 = scmp.eq.s32.totalorder %s31, 0
      %p193 = por %p191, %p192
      %s194 = ssub.s32 %s34, %s43
      %s195 = ssub.s32 %s32, %s51
      %s196 = sor.u32 %s194, %s195
      %s197 = ssub.s32 %s33, %s47
      %s198 = sor.u32 %s196, %s197
      %p199 = scmp.eq.s32.totalorder %s198, 0
      %s201 = sadd.s32 %s200, 1
      %s202 = scalar_select %p199, %s200, %s201
      %p205 = pneg %p199
      %p206 = scmp.eq.s32.totalorder %s25, 1
      %p207 = por %p205, %p206
      %p208 = scmp.ne.s32.totalorder %s200, %s203
      %p209 = scmp.eq.s32.totalorder %s25, 0
      %p210 = por %p208, %p209
      %p211 = scmp.ne.s32.totalorder %s200, %s203
      %p212 = scmp.eq.s32.totalorder %s30, 1
      %p213 = por %p211, %p212
      %p214 = scmp.ne.s32.totalorder %s203, %s204
      %p215 = scmp.eq.s32.totalorder %s30, 0
      %p216 = por %p214, %p215
      %p217 = scmp.ne.s32.totalorder %s203, %s204
      %p218 = scmp.eq.s32.totalorder %s31, 1
      %p219 = por %p217, %p218
      %p221 = scmp.ne.s32.totalorder %s204, %s220
      %p222 = scmp.eq.s32.totalorder %s31, 0
      %p223 = por %p221, %p222
      %p224 = scmp.le.s32.totalorder 1, %s25
      %p225 = scmp.lt.s32.totalorder %s25, 3
      %p226 = pnand %p224, %p225
      %p227 = pneg %p226
      // Predicated region
      $region9: #{tpu_custom_call.1} parent=5 // pred_check
        _
      $region10: #{tpu_custom_call.1} parent=5 // pred_check_branch
        %229 = sbr.rel (%p226) target = $region12
      $region11: #{tpu_custom_call.1} parent=5 // pred_region
        %s230 = ssub.s32 %s25, 1
        // Predicated region
        $region13: #{tpu_custom_call.1} parent=11 // pred_check
          %p231 = pneg %p128
        $region14: #{tpu_custom_call.1} parent=11 // pred_check_branch
          %233 = sbr.rel (%p231) target = $region16
        $region15: #{tpu_custom_call.1} parent=11 // pred_region
          %s234 = smul.u32 2, %s36
          %s236 = ssub.s32 1024, 1024
          %237 = vsyncadd [#allocation6], %s236
          %s238 = smul.addr %s35, 2
          %s239 = sadd.s32 %s234, %s238
          %s240 = smul.addr %s239, 128
          %s241 = scalar_lea.hbm %s2, %s240
          %s242 = sshll.u32 [#allocation7], 4
          %s243 = int_to_ptr.vmem [resolvable:$true] %s242
          %248 = dma.hbm_to_vmem [thread:$0]  %s241, 1024, %s243, [#allocation6], 256, 256, 16
        $region16: #{tpu_custom_call.1} parent=11 // pred_fallthru
          _
        // Predicated region
        $region17: #{tpu_custom_call.1} parent=11 // pred_check
          %p249 = pneg %p156
        $region18: #{tpu_custom_call.1} parent=11 // pred_check_branch
          %251 = sbr.rel (%p249) target = $region20
        $region19: #{tpu_custom_call.1} parent=11 // pred_region
          %s252 = smul.u32 2, %s36
          %s254 = ssub.s32 1024, 1024
          %255 = vsyncadd [#allocation9], %s254
          %s256 = smul.addr %s35, 2
          %s257 = sadd.s32 %s252, %s256
          %s258 = smul.addr %s257, 128
          %s259 = scalar_lea.hbm %s3, %s258
          %s260 = sshll.u32 [#allocation8], 4
          %s261 = int_to_ptr.vmem [resolvable:$true] %s260
          %266 = dma.hbm_to_vmem [thread:$0]  %s259, 1024, %s261, [#allocation9], 256, 256, 16
        $region20: #{tpu_custom_call.1} parent=11 // pred_fallthru
          _
      $region12: #{tpu_custom_call.1} parent=5 // pred_fallthru
        _
      %p267 = scmp.lt.s32.totalorder %s25, 2
      // Predicated region
      $region21: #{tpu_custom_call.1} parent=5 // pred_check
        %p268 = pneg %p267
      $region22: #{tpu_custom_call.1} parent=5 // pred_check_branch
        %270 = sbr.rel (%p268) target = $region24
      $region23: #{tpu_custom_call.1} parent=5 // pred_region
        // Predicated region
        $region25: #{tpu_custom_call.1} parent=23 // pred_check
          %p271 = pneg %p66
        $region26: #{tpu_custom_call.1} parent=23 // pred_check_branch
          %273 = sbr.rel (%p271) target = $region28
        $region27: #{tpu_custom_call.1} parent=23 // pred_region
          %s274 = sand.u32 %s56, 1
          %s275 = scalar_lea.sflag [#allocation3], %s274
          %s276 = sand.u32 %s56, 1
          %s277 = smul.addr %s276, 8
          %s278 = scalar_lea.vmem [#allocation2], %s277
          %s279 = smul.u32 2, %s33
          %s281 = ssub.s32 128, 128
          %282 = vsyncadd %s275, %s281
          %s283 = smul.addr %s34, 2
          %s284 = sadd.s32 %s279, %s283
          %s285 = smul.addr %s284, 64
          %s286 = scalar_lea.hbm %s0, %s285
          %s288 = sshll.u32 %s278, 4
          %s289 = int_to_ptr.vmem [resolvable:$true] %s288
          %291 = dma.hbm_to_vmem [thread:$0]  %s286, 128, %s289, %s275
        $region28: #{tpu_custom_call.1} parent=23 // pred_fallthru
          _
        // Predicated region
        $region29: #{tpu_custom_call.1} parent=23 // pred_check
          %p292 = pneg %p94
        $region30: #{tpu_custom_call.1} parent=23 // pred_check_branch
          %294 = sbr.rel (%p292) target = $region32
        $region31: #{tpu_custom_call.1} parent=23 // pred_region
          %s295 = sand.u32 %s25, 1
          %s296 = scalar_lea.sflag [#allocation6], %s295
          %s297 = sand.u32 %s84, 1
          %s298 = smul.addr %s297, 8
          %s299 = scalar_lea.vmem [#allocation5], %s298
          %s300 = smul.u32 2, %s33
          %s302 = ssub.s32 128, 128
          %303 = vsyncadd %s296, %s302
          %s304 = smul.addr %s34, 2
          %s305 = sadd.s32 %s300, %s304
          %s306 = smul.addr %s305, 64
          %s307 = scalar_lea.hbm %s1, %s306
          %s309 = sshll.u32 %s299, 4
          %s310 = int_to_ptr.vmem [resolvable:$true] %s309
          %312 = dma.hbm_to_vmem [thread:$0]  %s307, 128, %s310, %s296
        $region32: #{tpu_custom_call.1} parent=23 // pred_fallthru
          _
      $region24: #{tpu_custom_call.1} parent=5 // pred_fallthru
        _
      %p313 = scmp.le.s32.totalorder 1, %s25
      %p314 = scmp.lt.s32.totalorder %s25, 3
      %p315 = pnand %p313, %p314
      %p316 = pneg %p315
      // Predicated region
      $region33: #{tpu_custom_call.1} parent=5 // pred_check
        _
      $region34: #{tpu_custom_call.1} parent=5 // pred_check_branch
        %318 = sbr.rel (%p315) target = $region36
      $region35: #{tpu_custom_call.1} parent=5 // pred_region
        %s319 = ssub.s32 %s25, 1
        %s320 = sand.u32 %s59, 1
        %s321 = scalar_lea.sflag [#allocation3], %s320
        %s322 = sand.u32 %s59, 1
        %s323 = smul.addr %s322, 8
        %s324 = scalar_lea.vmem [#allocation2], %s323
        // Predicated region
        $region37: #{tpu_custom_call.1} parent=35 // pred_check
          %p325 = pneg %p72
        $region38: #{tpu_custom_call.1} parent=35 // pred_check_branch
          %327 = sbr.rel (%p325) target = $region40
        $region39: #{tpu_custom_call.1} parent=35 // pred_region
          %328 = dma.done %s321, 128
        $region40: #{tpu_custom_call.1} parent=35 // pred_fallthru
          _
        %s329 = sand.u32 %s30, 1
        %s330 = scalar_lea.sflag [#allocation6], %s329
        %s331 = sand.u32 %s87, 1
        %s332 = smul.addr %s331, 8
        %s333 = scalar_lea.vmem [#allocation5], %s332
        // Predicated region
        $region41: #{tpu_custom_call.1} parent=35 // pred_check
          %p334 = pneg %p100
        $region42: #{tpu_custom_call.1} parent=35 // pred_check_branch
          %336 = sbr.rel (%p334) target = $region44
        $region43: #{tpu_custom_call.1} parent=35 // pred_region
          %337 = dma.done %s330, 128
        $region44: #{tpu_custom_call.1} parent=35 // pred_fallthru
          _
        // Predicated region
        $region45: #{tpu_custom_call.1} parent=35 // pred_check
          %p338 = pneg %p128
        $region46: #{tpu_custom_call.1} parent=35 // pred_check_branch
          %340 = sbr.rel (%p338) target = $region48
        $region47: #{tpu_custom_call.1} parent=35 // pred_region
          %341 = dma.done [#allocation6], 1024
        $region48: #{tpu_custom_call.1} parent=35 // pred_fallthru
          _
        // Predicated region
        $region49: #{tpu_custom_call.1} parent=35 // pred_check
          %p342 = pneg %p156
        $region50: #{tpu_custom_call.1} parent=35 // pred_check_branch
          %344 = sbr.rel (%p342) target = $region52
        $region51: #{tpu_custom_call.1} parent=35 // pred_region
          %345 = dma.done [#allocation9], 1024
        $region52: #{tpu_custom_call.1} parent=35 // pred_fallthru
          _
        %s346 = sand.u32 %s59, 1
        %s347 = scalar_lea.sflag [#allocation3], %s346
        %s348 = sand.u32 %s59, 1
        %s349 = smul.addr %s348, 8
        %s350 = scalar_lea.vmem [#allocation2], %s349
        %p351 = pneg %p72
        %p352 = pneg %p69
        %s353 = sand.u32 %s30, 1
        %s354 = scalar_lea.sflag [#allocation6], %s353
        %s355 = sand.u32 %s87, 1
        %s356 = smul.addr %s355, 8
        %s357 = scalar_lea.vmem [#allocation5], %s356
        %p358 = pneg %p100
        %p359 = pneg %p97
        %p360 = pneg %p128
        %p361 = pneg %p125
        %p362 = pneg %p156
        %p363 = pneg %p153
        %p364 = pneg %p186
        %p365 = pneg %p183
        %s366 = sand.u32 %s173, 1
        %s367 = scalar_lea.sflag [#allocation4], %s366
        %s368 = sand.u32 %s173, 1
        %s369 = smul.addr %s368, 16
        %s370 = scalar_lea.vmem [#allocation10], %s369
        %p371 = pneg %p216
        %p372 = pneg %p213
        %s373 = sand.u32 %s203, 1
        %s374 = scalar_lea.sflag [#allocation12], %s373
        %s375 = sand.u32 %s203, 1
        %s376 = smul.addr %s375, 16
        %s377 = scalar_lea.vmem [#allocation11], %s376
        %s378 = smul.u32 2, %s36
        %s379 = smul.u32 2, %s36
        %s380 = smul.u32 2, %s36
        %s381 = smul.u32 2, %s36
        %s382 = smul.u32 2, %s36
        %s383 = smul.u32 2, %s36
        %v384 = vld [vmem:[%s324] ss:$4 sm:$0x3]
        %v386 = vlaneseq
        %v387 = vshrl.u32 %v386, 7
        %v388 = vsub.s32 0, %v387
        %v389 = vrot.slane %v384, %v388
        %v390 = vlaneseq
        %v391 = vshrl.u32 %v390, 7
        %v392 = vsub.s32 1, %v391
        %v393 = vrot.slane %v384, %v392
        %v396 = vld [vmem:[%s333] ss:$4 sm:$0x3]
        %v398 = vlaneseq
        %v399 = vshrl.u32 %v398, 7
        %v400 = vsub.s32 0, %v399
        %v401 = vrot.slane %v396, %v400
        %v402 = vlaneseq
        %v403 = vshrl.u32 %v402, 7
        %v404 = vsub.s32 1, %v403
        %v405 = vrot.slane %v396, %v404
        %v408 = vld [vmem:[#allocation7] sm:$0xff]
        %v409 = vld [vmem:[#allocation7 + $0x8] sm:$0xff]
        %v410 = vld [vmem:[#allocation8] sm:$0xff]
        %v411 = vld [vmem:[#allocation8 + $0x8] sm:$0xff]
        %v412 = vmul.f32 %v389, %v408
        %v413 = vmul.f32 %v393, %v409
        %v414 = vmul.f32 %v401, %v410
        %v415 = vmul.f32 %v405, %v411
        %v416 = vsub.f32 %v412, %v414
        %v417 = vsub.f32 %v413, %v415
        %v418 = vadd.f32 %v416, 0.0
        %v419 = vadd.f32 %v417, 0.0
        %v420 = vmul.f32 %v389, %v410
        %v421 = vmul.f32 %v393, %v411
        %v422 = vmul.f32 %v401, %v408
        %v423 = vmul.f32 %v405, %v409
        %v424 = vadd.f32 %v420, %v422
        %v425 = vadd.f32 %v421, %v423
        %v426 = vadd.f32 %v424, 0.0
        %v427 = vadd.f32 %v425, 0.0
        %s428 = scalar_lea.vmem %s324, 1 [#allocation2]
        %v429 = vld [vmem:[%s428] ss:$4 sm:$0x3]
        %v431 = vlaneseq
        %v432 = vshrl.u32 %v431, 7
        %v433 = vsub.s32 0, %v432
        %v434 = vrot.slane %v429, %v433
        %v435 = vlaneseq
        %v436 = vshrl.u32 %v435, 7
        %v437 = vsub.s32 1, %v436
        %v438 = vrot.slane %v429, %v437
        %s441 = scalar_lea.vmem %s333, 1 [#allocation5]
        %v442 = vld [vmem:[%s441] ss:$4 sm:$0x3]
        %v444 = vlaneseq
        %v445 = vshrl.u32 %v444, 7
        %v446 = vsub.s32 0, %v445
        %v447 = vrot.slane %v442, %v446
        %v448 = vlaneseq
        %v449 = vshrl.u32 %v448, 7
        %v450 = vsub.s32 1, %v449
        %v451 = vrot.slane %v442, %v450
        %s454 = scalar_lea.vmem [#allocation7], 16
        %v455 = vld [vmem:[%s454] sm:$0xff]
        %v456 = vld [vmem:[%s454 + $0x8] sm:$0xff]
        %s457 = scalar_lea.vmem [#allocation8], 16
        %v458 = vld [vmem:[%s457] sm:$0xff]
        %v459 = vld [vmem:[%s457 + $0x8] sm:$0xff]
        %v460 = vmul.f32 %v434, %v455
        %v461 = vmul.f32 %v438, %v456
        %v462 = vmul.f32 %v447, %v458
        %v463 = vmul.f32 %v451, %v459
        %v464 = vsub.f32 %v460, %v462
        %v465 = vsub.f32 %v461, %v463
        %v466 = vadd.f32 %v418, %v464
        %v467 = vadd.f32 %v419, %v465
        %v468 = vmul.f32 %v434, %v458
        %v469 = vmul.f32 %v438, %v459
        %v470 = vmul.f32 %v447, %v455
        %v471 = vmul.f32 %v451, %v456
        %v472 = vadd.f32 %v468, %v470
        %v473 = vadd.f32 %v469, %v471
        %v474 = vadd.f32 %v426, %v472
        %v475 = vadd.f32 %v427, %v473
        %s476 = scalar_lea.vmem %s324, 2 [#allocation2]
        %v477 = vld [vmem:[%s476] ss:$4 sm:$0x3]
        %v479 = vlaneseq
        %v480 = vshrl.u32 %v479, 7
        %v481 = vsub.s32 0, %v480
        %v482 = vrot.slane %v477, %v481
        %v483 = vlaneseq
        %v484 = vshrl.u32 %v483, 7
        %v485 = vsub.s32 1, %v484
        %v486 = vrot.slane %v477, %v485
        %s489 = scalar_lea.vmem %s333, 2 [#allocation5]
        %v490 = vld [vmem:[%s489] ss:$4 sm:$0x3]
        %v492 = vlaneseq
        %v493 = vshrl.u32 %v492, 7
        %v494 = vsub.s32 0, %v493
        %v495 = vrot.slane %v490, %v494
        %v496 = vlaneseq
        %v497 = vshrl.u32 %v496, 7
        %v498 = vsub.s32 1, %v497
        %v499 = vrot.slane %v490, %v498
        %s502 = scalar_lea.vmem [#allocation7], 32
        %v503 = vld [vmem:[%s502] sm:$0xff]
        %v504 = vld [vmem:[%s502 + $0x8] sm:$0xff]
        %s505 = scalar_lea.vmem [#allocation8], 32
        %v506 = vld [vmem:[%s505] sm:$0xff]
        %v507 = vld [vmem:[%s505 + $0x8] sm:$0xff]
        %v508 = vmul.f32 %v482, %v503
        %v509 = vmul.f32 %v486, %v504
        %v510 = vmul.f32 %v495, %v506
        %v511 = vmul.f32 %v499, %v507
        %v512 = vsub.f32 %v508, %v510
        %v513 = vsub.f32 %v509, %v511
        %v514 = vadd.f32 %v466, %v512
        %v515 = vadd.f32 %v467, %v513
        %v516 = vmul.f32 %v482, %v506
        %v517 = vmul.f32 %v486, %v507
        %v518 = vmul.f32 %v495, %v503
        %v519 = vmul.f32 %v499, %v504
        %v520 = vadd.f32 %v516, %v518
        %v521 = vadd.f32 %v517, %v519
        %v522 = vadd.f32 %v474, %v520
        %v523 = vadd.f32 %v475, %v521
        %s524 = scalar_lea.vmem %s324, 3 [#allocation2]
        %v525 = vld [vmem:[%s524] ss:$4 sm:$0x3]
        %v527 = vlaneseq
        %v528 = vshrl.u32 %v527, 7
        %v529 = vsub.s32 0, %v528
        %v530 = vrot.slane %v525, %v529
        %v531 = vlaneseq
        %v532 = vshrl.u32 %v531, 7
        %v533 = vsub.s32 1, %v532
        %v534 = vrot.slane %v525, %v533
        %s537 = scalar_lea.vmem %s333, 3 [#allocation5]
        %v538 = vld [vmem:[%s537] ss:$4 sm:$0x3]
        %v540 = vlaneseq
        %v541 = vshrl.u32 %v540, 7
        %v542 = vsub.s32 0, %v541
        %v543 = vrot.slane %v538, %v542
        %v544 = vlaneseq
        %v545 = vshrl.u32 %v544, 7
        %v546 = vsub.s32 1, %v545
        %v547 = vrot.slane %v538, %v546
        %s550 = scalar_lea.vmem [#allocation7], 48
        %v551 = vld [vmem:[%s550] sm:$0xff]
        %v552 = vld [vmem:[%s550 + $0x8] sm:$0xff]
        %s553 = scalar_lea.vmem [#allocation8], 48
        %v554 = vld [vmem:[%s553] sm:$0xff]
        %v555 = vld [vmem:[%s553 + $0x8] sm:$0xff]
        %v556 = vmul.f32 %v530, %v551
        %v557 = vmul.f32 %v534, %v552
        %v558 = vmul.f32 %v543, %v554
        %v559 = vmul.f32 %v547, %v555
        %v560 = vsub.f32 %v556, %v558
        %v561 = vsub.f32 %v557, %v559
        %v562 = vadd.f32 %v514, %v560
        %v563 = vadd.f32 %v515, %v561
        %v564 = vmul.f32 %v530, %v554
        %v565 = vmul.f32 %v534, %v555
        %v566 = vmul.f32 %v543, %v551
        %v567 = vmul.f32 %v547, %v552
        %v568 = vadd.f32 %v564, %v566
        %v569 = vadd.f32 %v565, %v567
        %v570 = vadd.f32 %v522, %v568
        %v571 = vadd.f32 %v523, %v569
        %572 = vst [vmem:[%s370] sm:$0xff] %v562
        %573 = vst [vmem:[%s370 + $0x8] sm:$0xff] %v563
        %574 = vst [vmem:[%s377] sm:$0xff] %v570
        %575 = vst [vmem:[%s377 + $0x8] sm:$0xff] %v571
        %s576 = sand.u32 %s173, 1
        %s577 = scalar_lea.sflag [#allocation4], %s576
        %s578 = sand.u32 %s173, 1
        %s579 = smul.addr %s578, 16
        %s580 = scalar_lea.vmem [#allocation10], %s579
        %s581 = sand.u32 %s203, 1
        %s582 = scalar_lea.sflag [#allocation12], %s581
        %s583 = sand.u32 %s203, 1
        %s584 = smul.addr %s583, 16
        %s585 = scalar_lea.vmem [#allocation11], %s584
        // Predicated region
        $region53: #{tpu_custom_call.1} parent=35 // pred_check
          %p586 = pneg %p183
        $region54: #{tpu_custom_call.1} parent=35 // pred_check_branch
          %588 = sbr.rel (%p586) target = $region56
        $region55: #{tpu_custom_call.1} parent=35 // pred_region
          %s589 = smul.u32 2, %s36
          %s591 = ssub.s32 256, 256
          %592 = vsyncadd %s577, %s591
          %s593 = smul.addr %s35, 2
          %s594 = sadd.s32 %s589, %s593
          %s595 = smul.addr %s37, 2
          %s596 = sadd.s32 %s594, %s595
          %s597 = smul.addr %s596, 128
          %s598 = scalar_lea.hbm %s4, %s597
          %s600 = sshll.u32 %s580, 4
          %s601 = int_to_ptr.vmem [resolvable:$true] %s600
          %603 = dma.vmem_to_hbm [thread:$0]  %s601, 256, %s598, %s577
        $region56: #{tpu_custom_call.1} parent=35 // pred_fallthru
          _
        // Predicated region
        $region57: #{tpu_custom_call.1} parent=35 // pred_check
          %p604 = pneg %p213
        $region58: #{tpu_custom_call.1} parent=35 // pred_check_branch
          %606 = sbr.rel (%p604) target = $region60
        $region59: #{tpu_custom_call.1} parent=35 // pred_region
          %s607 = smul.u32 2, %s36
          %s609 = ssub.s32 256, 256
          %610 = vsyncadd %s582, %s609
          %s611 = smul.addr %s35, 2
          %s612 = sadd.s32 %s607, %s611
          %s613 = smul.addr %s37, 2
          %s614 = sadd.s32 %s612, %s613
          %s615 = smul.addr %s614, 128
          %s616 = scalar_lea.hbm %s5, %s615
          %s618 = sshll.u32 %s585, 4
          %s619 = int_to_ptr.vmem [resolvable:$true] %s618
          %621 = dma.vmem_to_hbm [thread:$0]  %s619, 256, %s616, %s582
        $region60: #{tpu_custom_call.1} parent=35 // pred_fallthru
          _
      $region36: #{tpu_custom_call.1} parent=5 // pred_fallthru
        _
      %p622 = scmp.le.s32.totalorder 2, %s25
      // Predicated region
      $region61: #{tpu_custom_call.1} parent=5 // pred_check
        %p623 = pneg %p622
      $region62: #{tpu_custom_call.1} parent=5 // pred_check_branch
        %625 = sbr.rel (%p623) target = $region64
      $region63: #{tpu_custom_call.1} parent=5 // pred_region
        %s626 = ssub.s32 %s25, 2
        // Predicated region
        $region65: #{tpu_custom_call.1} parent=63 // pred_check
          %p627 = pneg %p189
        $region66: #{tpu_custom_call.1} parent=63 // pred_check_branch
          %629 = sbr.rel (%p627) target = $region68
        $region67: #{tpu_custom_call.1} parent=63 // pred_region
          %s630 = sand.u32 %s174, 1
          %s631 = scalar_lea.sflag [#allocation4], %s630
          %s632 = sand.u32 %s174, 1
          %s633 = smul.addr %s632, 16
          %s634 = scalar_lea.vmem [#allocation10], %s633
          %635 = dma.done %s631, 256
        $region68: #{tpu_custom_call.1} parent=63 // pred_fallthru
          _
        // Predicated region
        $region69: #{tpu_custom_call.1} parent=63 // pred_check
          %p636 = pneg %p219
        $region70: #{tpu_custom_call.1} parent=63 // pred_check_branch
          %638 = sbr.rel (%p636) target = $region72
        $region71: #{tpu_custom_call.1} parent=63 // pred_region
          %s639 = sand.u32 %s204, 1
          %s640 = scalar_lea.sflag [#allocation12], %s639
          %s641 = sand.u32 %s204, 1
          %s642 = smul.addr %s641, 16
          %s643 = scalar_lea.vmem [#allocation11], %s642
          %644 = dma.done %s640, 256
        $region72: #{tpu_custom_call.1} parent=63 // pred_fallthru
          _
      $region64: #{tpu_custom_call.1} parent=5 // pred_fallthru
        _
    $region6: #{tpu_custom_call.1} parent=1 // loop_footer
      %s29 = sadd.s32 1, %s25
    $region7: #{tpu_custom_call.1} parent=1 // loop_footer_branch
      %24 = sbr.rel target = $region3
    $region8: #{tpu_custom_call.1} parent=1 // loop_exit
      _
    %645 = vsyncpa [#allocation3], 1
    %s646 = scalar_lea.sflag [#allocation3], 1
    %647 = vsyncpa %s646, 1
    %648 = vsyncpa [#allocation6], 1
    %s649 = scalar_lea.sflag [#allocation6], 1
    %650 = vsyncpa %s649, 1
    %651 = vsyncpa [#allocation9], 1
    %652 = vsyncpa [#allocation4], 1
    %s653 = scalar_lea.sflag [#allocation4], 1
    %654 = vsyncpa %s653, 1
    %655 = vsyncpa [#allocation12], 1
    %s656 = scalar_lea.sflag [#allocation12], 1
    %657 = vsyncpa %s656, 1

</llo_original>
